<compile_context>
chip_gen: v5e
topology: v5e:2x2
jax: 0.10.0
libtpu: 0.0.40
codegen_flags: <defaults>
</compile_context>

<pallas_src>
from functools import partial

import jax
import jax.numpy as jnp
from jax.experimental import pallas as pl
from jax.experimental.pallas import tpu as pltpu


def _uwl_kernel(n_valid,
                probs_ref, t0_ref, t1_ref, logits1_ref, logitsF_ref,
                sw_ref, partials_ref):
    """One lane-tile of the batch. All per-sample quantities are (1, TL) lane-dense."""
    tl = probs_ref.shape[1]
    c = logits1_ref.shape[0]
    tile = pl.program_id(0)

    p = probs_ref[...]                                   # (1, TL) f32 probabilities
    t0 = t0_ref[...]                                     # (1, TL) f32 0/1
    t1 = t1_ref[...]                                     # (1, TL) i32 class id
    lg1 = logits1_ref[...].astype(jnp.float32)           # (C, TL) upcast in VMEM
    lgF = logitsF_ref[...].astype(jnp.float32)           # (C, TL)

    # Validity mask for padded tail rows (N padded to a multiple of TL).
    lane = jax.lax.broadcasted_iota(jnp.int32, (1, tl), 1)
    gidx = tile * tl + lane
    valid = (gidx < n_valid).astype(jnp.float32)         # (1, TL)

    # ---- BCE over all (valid) samples; torch clamps log at -100 ----
    logp = jnp.maximum(jnp.log(p), -100.0)
    log1mp = jnp.maximum(jnp.log(1.0 - p), -100.0)
    bce = -(t0 * logp + (1.0 - t0) * log1mp) * valid     # (1, TL)
    s_bce = jnp.sum(bce, axis=1, keepdims=True)          # (1, 1)

    # ---- mask = target0 > 0 (and valid) ----
    maskf = jnp.where(t0 > 0.0, valid, 0.0)              # (1, TL)
    cnt = jnp.sum(maskf, axis=1, keepdims=True)          # (1, 1)

    # ---- per-sample cross entropy (stable logsumexp over the C sublane axis) ----
    cls = jax.lax.broadcasted_iota(jnp.int32, (c, tl), 0)
    sel = (cls == t1)                                    # (C, TL) reused for both CEs

    def per_sample_ce(lg):
        m = jnp.max(lg, axis=0, keepdims=True)                                  # (1, TL)
        lse = m + jnp.log(jnp.sum(jnp.exp(lg - m), axis=0, keepdims=True))      # (1, TL)
        picked = jnp.sum(jnp.where(sel, lg, 0.0), axis=0, keepdims=True)        # (1, TL)
        return lse - picked

    ce1 = per_sample_ce(lg1) * maskf                     # zero off-mask / padded
    ceF = per_sample_ce(lgF) * maskf

    # Raw (unnormalized) sample weight; wrapper applies the cnt/S1 scale.
    sw_ref[...] = ce1                                    # lane-dense (1, TL) store

    s1 = jnp.sum(ce1, axis=1, keepdims=True)             # (1, 1)
    s2 = jnp.sum(ce1 * ceF, axis=1, keepdims=True)       # (1, 1)

    # Pack the four per-tile partial sums into lanes 0..3 of a full (1,8,128) slab
    # (unmasked store; reduced across tiles in the wrapper -> grid axis stays parallel).
    out_lane = jax.lax.broadcasted_iota(jnp.int32, (1, 8, 128), 2)
    pv = (jnp.where(out_lane == 0, s_bce, 0.0)
          + jnp.where(out_lane == 1, s1, 0.0)
          + jnp.where(out_lane == 2, s2, 0.0)
          + jnp.where(out_lane == 3, cnt, 0.0))
    partials_ref[...] = pv


def _choose_tile_lanes(c, n128, vmem_budget_bytes=16 << 20):
    """Pick a lane-tile size so double-buffered streams fit comfortably in scoped VMEM
    on every generation (v7x has only 64 MiB physical / 32 MiB scoped by default)."""
    # 2x pipeline buffers * (2 logit streams (<=f32) + 3 per-sample streams + sw out)
    per_lane = 2 * (2 * c * 4 + 3 * 4 + 4)
    tl = (vmem_budget_bytes // per_lane) // 128 * 128
    tl = max(128, min(int(tl), 4096))
    return int(min(tl, n128))


def united_weighted_loss(inputs, target, *, alpha, beta=1.01):
    """inputs = (input0 [N], input1 [N,C], input_final [N,C]); target int [N,2].

    Returns (normal_mode_loss, united_mode_loss, sample_weight[N]).
    Logits are consumed in their input dtype (pass bf16 to halve HBM traffic)."""
    input0, input1 = inputs[0], inputs[1]
    input_final = inputs[-1]
    N, C = input1.shape

    n128 = ((N + 127) // 128) * 128
    TL = _choose_tile_lanes(C, n128)
    N_pad = pl.cdiv(N, TL) * TL
    num_tiles = N_pad // TL
    pad = N_pad - N

    # Lane-dense per-sample streams: (1, N_pad)
    probs0 = jnp.pad(input0.astype(jnp.float32), (0, pad)).reshape(1, N_pad)
    t0 = jnp.pad(target[:, 0].astype(jnp.float32), (0, pad)).reshape(1, N_pad)
    t1 = jnp.pad(target[:, 1].astype(jnp.int32), (0, pad)).reshape(1, N_pad)
    # Logits transposed to (C, N_pad): batch on lanes (C is small); dtype preserved (bf16 ok).
    lg1 = jnp.pad(input1, ((0, pad), (0, 0))).T
    lgF = jnp.pad(input_final, ((0, pad), (0, 0))).T

    kernel = partial(_uwl_kernel, N)

    in_specs = [
        pl.BlockSpec((1, TL), lambda i: (0, i)),     # probs0
        pl.BlockSpec((1, TL), lambda i: (0, i)),     # target0
        pl.BlockSpec((1, TL), lambda i: (0, i)),     # target1
        pl.BlockSpec((C, TL), lambda i: (0, i)),     # logits1   (C, N_pad)
        pl.BlockSpec((C, TL), lambda i: (0, i)),     # logits_final
    ]
    out_shapes = (
        jax.ShapeDtypeStruct((1, N_pad), jnp.float32),          # raw per-sample CE (-> sw)
        jax.ShapeDtypeStruct((num_tiles, 8, 128), jnp.float32),  # per-tile partial sums
    )
    out_specs = (
        pl.BlockSpec((1, TL), lambda i: (0, i)),
        pl.BlockSpec((1, 8, 128), lambda i: (i, 0, 0)),
    )

    ce1_raw, partials = pl.pallas_call(
        kernel,
        out_shape=out_shapes,
        grid=(num_tiles,),
        in_specs=in_specs,
        out_specs=out_specs,
        compiler_params=pltpu.CompilerParams(
            dimension_semantics=("parallel",),   # tiles are independent -> megacore on v7x
            vmem_limit_bytes=32 << 20,
        ),
    )(probs0, t0, t1, lg1, lgF)

    # Tiny scalar epilogue in XLA (one reduce over num_tiles + a few scalar ops).
    psum = jnp.sum(partials[:, 0, :], axis=0)            # (128,)
    s_bce, s1, s2, cnt = psum[0], psum[1], psum[2], psum[3]

    loss1 = s_bce / jnp.float32(N)
    loss2 = s1 / cnt                                      # NaN if mask empty (torch parity)
    loss_normal = loss1 + alpha * loss2
    loss_united = beta * (s2 / s1)                        # == beta * mean(ceF * sw)
    sample_weight = ce1_raw[0, :N] * (cnt / s1)           # zeros at un-masked positions
    return loss_normal, loss_united, sample_weight


def _reference(inputs, target, alpha, beta):
    """Pure-JAX reference mirroring the PyTorch module (mask instead of fancy-indexing)."""
    input0, input1, input_final = inputs[0], inputs[1], inputs[-1]
    t0 = target[:, 0].astype(jnp.float32)
    t1 = target[:, 1].astype(jnp.int32)
    m = (t0 > 0).astype(jnp.float32)
    cnt = m.sum()

    bce = -(t0 * jnp.maximum(jnp.log(input0), -100.0)
            + (1 - t0) * jnp.maximum(jnp.log(1 - input0), -100.0))
    loss1 = bce.mean()

    def ce(logits):
        lse = jax.nn.logsumexp(logits, axis=-1)
        picked = jnp.take_along_axis(logits, t1[:, None], axis=-1)[:, 0]
        return lse - picked

    ce1 = ce(input1) * m
    loss2 = ce1.sum() / cnt
    sw = ce1 / ce1.sum() * cnt
    ceF = ce(input_final) * m
    loss3 = (ceF * sw).sum() / cnt
    return loss1 + alpha * loss2, beta * loss3, sw


if __name__ == "__main__":
    key = jax.random.PRNGKey(0)
    N, C = 16, 4
    k0, k1, k2, k3, k4 = jax.random.split(key, 5)

    input0 = jax.nn.sigmoid(jax.random.normal(k0, (N,), dtype=jnp.float32))
    # Logits kept in bf16 through HBM (kernel upcasts in VMEM).
    input1 = jax.random.normal(k1, (N, C), dtype=jnp.float32).astype(jnp.bfloat16)
    input_final = jax.random.normal(k2, (N, C), dtype=jnp.float32).astype(jnp.bfloat16)

    target0 = (jax.random.uniform(k3, (N,)) > 0.4).astype(jnp.int32)
    target0 = target0.at[0].set(1)  # guarantee at least one masked sample
    target1 = jax.random.randint(k4, (N,), 0, C, dtype=jnp.int32)
    target = jnp.stack([target0, target1], axis=1)  # [N, 2]

    alpha, beta = 0.5, 1.01
    inputs = (input0, input1, input_final)

    loss_normal, loss_united, sw = united_weighted_loss(inputs, target, alpha=alpha, beta=beta)
    jax.block_until_ready((loss_normal, loss_united, sw))

    # Reference computed in f32 on the same bf16-rounded logits.
    ref_inputs = (input0, input1.astype(jnp.float32), input_final.astype(jnp.float32))
    ref_normal, ref_united, ref_sw = _reference(ref_inputs, target, alpha, beta)
    assert jnp.allclose(loss_normal, ref_normal, rtol=1e-4, atol=1e-5), (loss_normal, ref_normal)
    assert jnp.allclose(loss_united, ref_united, rtol=1e-4, atol=1e-5), (loss_united, ref_united)
    assert jnp.allclose(sw, ref_sw, rtol=1e-4, atol=1e-5)

    print("KERNEL_OK")
</pallas_src>

<mosaic_0001>
module attributes {stable_mosaic.version = 11 : i64} {
  func.func @_uwl_kernel(%arg0: i32, %arg1: memref<1x128xf32, #tpu.memory_space<vmem>>, %arg2: memref<1x128xf32, #tpu.memory_space<vmem>>, %arg3: memref<1x128xi32, #tpu.memory_space<vmem>>, %arg4: memref<4x128xbf16, #tpu.memory_space<vmem>>, %arg5: memref<4x128xbf16, #tpu.memory_space<vmem>>, %arg6: memref<1x128xf32, #tpu.memory_space<vmem>>, %arg7: memref<1x8x128xf32, #tpu.memory_space<vmem>>) attributes {dimension_semantics = [#tpu.dimension_semantics<parallel>], iteration_bounds = array<i64: 1>, scalar_prefetch = 0 : i64, scratch_operands = 0 : i64, tpu.core_type = #tpu.core_type<tc>, window_params = [{transform_indices = @transform_0, window_bounds = array<i64: 1, 128>}, {transform_indices = @transform_1, window_bounds = array<i64: 1, 128>}, {transform_indices = @transform_2, window_bounds = array<i64: 1, 128>}, {transform_indices = @transform_3, window_bounds = array<i64: 4, 128>}, {transform_indices = @transform_4, window_bounds = array<i64: 4, 128>}, {transform_indices = @transform_5, window_bounds = array<i64: 1, 128>}, {transform_indices = @transform_6, window_bounds = array<i64: 1, 8, 128>}]} {
    %c0 = arith.constant 0 : index
    %c0_0 = arith.constant 0 : index
    %0 = vector.load %arg1[%c0, %c0_0] : memref<1x128xf32, #tpu.memory_space<vmem>>, vector<1x128xf32>
    %c0_1 = arith.constant 0 : index
    %c0_2 = arith.constant 0 : index
    %1 = vector.load %arg2[%c0_1, %c0_2] : memref<1x128xf32, #tpu.memory_space<vmem>>, vector<1x128xf32>
    %c0_3 = arith.constant 0 : index
    %c0_4 = arith.constant 0 : index
    %2 = vector.load %arg3[%c0_3, %c0_4] : memref<1x128xi32, #tpu.memory_space<vmem>>, vector<1x128xi32>
    %c0_5 = arith.constant 0 : index
    %c0_6 = arith.constant 0 : index
    %3 = vector.load %arg4[%c0_5, %c0_6] : memref<4x128xbf16, #tpu.memory_space<vmem>>, vector<4x128xbf16>
    %4 = arith.extf %3 : vector<4x128xbf16> to vector<4x128xf32>
    %c0_7 = arith.constant 0 : index
    %c0_8 = arith.constant 0 : index
    %5 = vector.load %arg5[%c0_7, %c0_8] : memref<4x128xbf16, #tpu.memory_space<vmem>>, vector<4x128xbf16>
    %6 = arith.extf %5 : vector<4x128xbf16> to vector<4x128xf32>
    %7 = tpu.iota {dimensions = array<i32: 1>} : vector<1x128xi32>
    %c128_i32 = arith.constant 128 : i32
    %8 = arith.muli %arg0, %c128_i32 : i32
    %9 = vector.broadcast %8 : i32 to vector<1x128xi32>
    %10 = arith.addi %9, %7 : vector<1x128xi32>
    %c16_i32 = arith.constant 16 : i32
    %11 = vector.broadcast %c16_i32 : i32 to vector<1x128xi32>
    %12 = arith.cmpi slt, %10, %11 : vector<1x128xi32>
    %13 = arith.extui %12 : vector<1x128xi1> to vector<1x128xi32>
    %14 = arith.sitofp %13 : vector<1x128xi32> to vector<1x128xf32>
    %15 = math.log %0 : vector<1x128xf32>
    %cst = arith.constant -1.000000e+02 : f32
    %16 = vector.broadcast %cst : f32 to vector<1x128xf32>
    %17 = arith.maximumf %15, %16 : vector<1x128xf32>
    %cst_9 = arith.constant 1.000000e+00 : f32
    %18 = vector.broadcast %cst_9 : f32 to vector<1x128xf32>
    %19 = arith.subf %18, %0 : vector<1x128xf32>
    %20 = math.log %19 : vector<1x128xf32>
    %cst_10 = arith.constant -1.000000e+02 : f32
    %21 = vector.broadcast %cst_10 : f32 to vector<1x128xf32>
    %22 = arith.maximumf %20, %21 : vector<1x128xf32>
    %23 = arith.mulf %1, %17 : vector<1x128xf32>
    %cst_11 = arith.constant 1.000000e+00 : f32
    %24 = vector.broadcast %cst_11 : f32 to vector<1x128xf32>
    %25 = arith.subf %24, %1 : vector<1x128xf32>
    %26 = arith.mulf %25, %22 : vector<1x128xf32>
    %27 = arith.addf %23, %26 : vector<1x128xf32>
    %cst_12 = arith.constant 0.000000e+00 : f32
    %28 = vector.broadcast %cst_12 : f32 to vector<1x128xf32>
    %29 = arith.subf %28, %27 : vector<1x128xf32>
    %30 = arith.mulf %29, %14 : vector<1x128xf32>
    %cst_13 = arith.constant dense<0.000000e+00> : vector<1xf32>
    %31 = vector.multi_reduction <add>, %30, %cst_13 [1] : vector<1x128xf32> to vector<1xf32>
    %32 = vector.shape_cast %31 : vector<1xf32> to vector<1x1xf32>
    %cst_14 = arith.constant 0.000000e+00 : f32
    %33 = vector.broadcast %cst_14 : f32 to vector<1x128xf32>
    %34 = arith.cmpf ogt, %1, %33 : vector<1x128xf32>
    %cst_15 = arith.constant 0.000000e+00 : f32
    %35 = vector.broadcast %cst_15 : f32 to vector<1x128xf32>
    %36 = arith.select %34, %14, %35 : vector<1x128xi1>, vector<1x128xf32>
    %cst_16 = arith.constant dense<0.000000e+00> : vector<1xf32>
    %37 = vector.multi_reduction <add>, %36, %cst_16 [1] : vector<1x128xf32> to vector<1xf32>
    %38 = vector.shape_cast %37 : vector<1xf32> to vector<1x1xf32>
    %39 = tpu.iota {dimensions = array<i32: 0>} : vector<4x128xi32>
    %40 = vector.broadcast %2 : vector<1x128xi32> to vector<4x128xi32>
    %41 = arith.cmpi eq, %39, %40 : vector<4x128xi32>
    %cst_17 = arith.constant dense<0xFF800000> : vector<128xf32>
    %42 = vector.multi_reduction <maximumf>, %4, %cst_17 [0] : vector<4x128xf32> to vector<128xf32>
    %43 = vector.shape_cast %42 : vector<128xf32> to vector<1x128xf32>
    %44 = vector.broadcast %43 : vector<1x128xf32> to vector<4x128xf32>
    %45 = arith.subf %4, %44 : vector<4x128xf32>
    %46 = math.exp %45 : vector<4x128xf32>
    %cst_18 = arith.constant dense<0.000000e+00> : vector<128xf32>
    %47 = vector.multi_reduction <add>, %46, %cst_18 [0] : vector<4x128xf32> to vector<128xf32>
    %48 = vector.shape_cast %47 : vector<128xf32> to vector<1x128xf32>
    %49 = math.log %48 : vector<1x128xf32>
    %50 = arith.addf %43, %49 : vector<1x128xf32>
    %cst_19 = arith.constant 0.000000e+00 : f32
    %51 = vector.broadcast %cst_19 : f32 to vector<4x128xf32>
    %52 = arith.select %41, %4, %51 : vector<4x128xi1>, vector<4x128xf32>
    %cst_20 = arith.constant dense<0.000000e+00> : vector<128xf32>
    %53 = vector.multi_reduction <add>, %52, %cst_20 [0] : vector<4x128xf32> to vector<128xf32>
    %54 = vector.shape_cast %53 : vector<128xf32> to vector<1x128xf32>
    %55 = arith.subf %50, %54 : vector<1x128xf32>
    %56 = arith.mulf %55, %36 : vector<1x128xf32>
    %cst_21 = arith.constant dense<0xFF800000> : vector<128xf32>
    %57 = vector.multi_reduction <maximumf>, %6, %cst_21 [0] : vector<4x128xf32> to vector<128xf32>
    %58 = vector.shape_cast %57 : vector<128xf32> to vector<1x128xf32>
    %59 = vector.broadcast %58 : vector<1x128xf32> to vector<4x128xf32>
    %60 = arith.subf %6, %59 : vector<4x128xf32>
    %61 = math.exp %60 : vector<4x128xf32>
    %cst_22 = arith.constant dense<0.000000e+00> : vector<128xf32>
    %62 = vector.multi_reduction <add>, %61, %cst_22 [0] : vector<4x128xf32> to vector<128xf32>
    %63 = vector.shape_cast %62 : vector<128xf32> to vector<1x128xf32>
    %64 = math.log %63 : vector<1x128xf32>
    %65 = arith.addf %58, %64 : vector<1x128xf32>
    %cst_23 = arith.constant 0.000000e+00 : f32
    %66 = vector.broadcast %cst_23 : f32 to vector<4x128xf32>
    %67 = arith.select %41, %6, %66 : vector<4x128xi1>, vector<4x128xf32>
    %cst_24 = arith.constant dense<0.000000e+00> : vector<128xf32>
    %68 = vector.multi_reduction <add>, %67, %cst_24 [0] : vector<4x128xf32> to vector<128xf32>
    %69 = vector.shape_cast %68 : vector<128xf32> to vector<1x128xf32>
    %70 = arith.subf %65, %69 : vector<1x128xf32>
    %71 = arith.mulf %70, %36 : vector<1x128xf32>
    %c0_25 = arith.constant 0 : index
    %c0_26 = arith.constant 0 : index
    %72 = vector.load %arg6[%c0_25, %c0_26] : memref<1x128xf32, #tpu.memory_space<vmem>>, vector<1x128xf32>
    tpu.vector_store %arg6[%c0_25, %c0_26], %56 {strides = array<i32>} : memref<1x128xf32, #tpu.memory_space<vmem>>, vector<1x128xf32>,
    %cst_27 = arith.constant dense<0.000000e+00> : vector<1xf32>
    %73 = vector.multi_reduction <add>, %56, %cst_27 [1] : vector<1x128xf32> to vector<1xf32>
    %74 = vector.shape_cast %73 : vector<1xf32> to vector<1x1xf32>
    %75 = arith.mulf %56, %71 : vector<1x128xf32>
    %cst_28 = arith.constant dense<0.000000e+00> : vector<1xf32>
    %76 = vector.multi_reduction <add>, %75, %cst_28 [1] : vector<1x128xf32> to vector<1xf32>
    %77 = vector.shape_cast %76 : vector<1xf32> to vector<1x1xf32>
    %78 = tpu.iota {dimensions = array<i32: 2>} : vector<1x8x128xi32>
    %c0_i32 = arith.constant 0 : i32
    %79 = vector.broadcast %c0_i32 : i32 to vector<1x8x128xi32>
    %80 = arith.cmpi eq, %78, %79 : vector<1x8x128xi32>
    %cst_29 = arith.constant 0.000000e+00 : f32
    %81 = vector.shape_cast %32 : vector<1x1xf32> to vector<1x1x1xf32>
    %82 = vector.broadcast %81 : vector<1x1x1xf32> to vector<1x8x128xf32>
    %83 = vector.broadcast %cst_29 : f32 to vector<1x8x128xf32>
    %84 = arith.select %80, %82, %83 : vector<1x8x128xi1>, vector<1x8x128xf32>
    %c1_i32 = arith.constant 1 : i32
    %85 = vector.broadcast %c1_i32 : i32 to vector<1x8x128xi32>
    %86 = arith.cmpi eq, %78, %85 : vector<1x8x128xi32>
    %cst_30 = arith.constant 0.000000e+00 : f32
    %87 = vector.shape_cast %74 : vector<1x1xf32> to vector<1x1x1xf32>
    %88 = vector.broadcast %87 : vector<1x1x1xf32> to vector<1x8x128xf32>
    %89 = vector.broadcast %cst_30 : f32 to vector<1x8x128xf32>
    %90 = arith.select %86, %88, %89 : vector<1x8x128xi1>, vector<1x8x128xf32>
    %91 = arith.addf %84, %90 : vector<1x8x128xf32>
    %c2_i32 = arith.constant 2 : i32
    %92 = vector.broadcast %c2_i32 : i32 to vector<1x8x128xi32>
    %93 = arith.cmpi eq, %78, %92 : vector<1x8x128xi32>
    %cst_31 = arith.constant 0.000000e+00 : f32
    %94 = vector.shape_cast %77 : vector<1x1xf32> to vector<1x1x1xf32>
    %95 = vector.broadcast %94 : vector<1x1x1xf32> to vector<1x8x128xf32>
    %96 = vector.broadcast %cst_31 : f32 to vector<1x8x128xf32>
    %97 = arith.select %93, %95, %96 : vector<1x8x128xi1>, vector<1x8x128xf32>
    %98 = arith.addf %91, %97 : vector<1x8x128xf32>
    %c3_i32 = arith.constant 3 : i32
    %99 = vector.broadcast %c3_i32 : i32 to vector<1x8x128xi32>
    %100 = arith.cmpi eq, %78, %99 : vector<1x8x128xi32>
    %cst_32 = arith.constant 0.000000e+00 : f32
    %101 = vector.shape_cast %38 : vector<1x1xf32> to vector<1x1x1xf32>
    %102 = vector.broadcast %101 : vector<1x1x1xf32> to vector<1x8x128xf32>
    %103 = vector.broadcast %cst_32 : f32 to vector<1x8x128xf32>
    %104 = arith.select %100, %102, %103 : vector<1x8x128xi1>, vector<1x8x128xf32>
    %105 = arith.addf %98, %104 : vector<1x8x128xf32>
    %c0_33 = arith.constant 0 : index
    %c0_34 = arith.constant 0 : index
    %c0_35 = arith.constant 0 : index
    %106 = vector.load %arg7[%c0_33, %c0_34, %c0_35] : memref<1x8x128xf32, #tpu.memory_space<vmem>>, vector<1x8x128xf32>
    tpu.vector_store %arg7[%c0_33, %c0_34, %c0_35], %105 {strides = array<i32>} : memref<1x8x128xf32, #tpu.memory_space<vmem>>, vector<1x8x128xf32>,
    return
  }
  func.func @transform_0(%arg0: i32) -> (i32, i32) {
    %c0_i32 = arith.constant 0 : i32
    %c0_i32_0 = arith.constant 0 : i32
    return %c0_i32, %arg0 : i32, i32
  }
  func.func @transform_1(%arg0: i32) -> (i32, i32) {
    %c0_i32 = arith.constant 0 : i32
    %c0_i32_0 = arith.constant 0 : i32
    return %c0_i32, %arg0 : i32, i32
  }
  func.func @transform_2(%arg0: i32) -> (i32, i32) {
    %c0_i32 = arith.constant 0 : i32
    %c0_i32_0 = arith.constant 0 : i32
    return %c0_i32, %arg0 : i32, i32
  }
  func.func @transform_3(%arg0: i32) -> (i32, i32) {
    %c0_i32 = arith.constant 0 : i32
    %c0_i32_0 = arith.constant 0 : i32
    return %c0_i32, %arg0 : i32, i32
  }
  func.func @transform_4(%arg0: i32) -> (i32, i32) {
    %c0_i32 = arith.constant 0 : i32
    %c0_i32_0 = arith.constant 0 : i32
    return %c0_i32, %arg0 : i32, i32
  }
  func.func @transform_5(%arg0: i32) -> (i32, i32) {
    %c0_i32 = arith.constant 0 : i32
    %c0_i32_0 = arith.constant 0 : i32
    return %c0_i32, %arg0 : i32, i32
  }
  func.func @transform_6(%arg0: i32) -> (i32, i32, i32) {
    %c0_i32 = arith.constant 0 : i32
    %c0_i32_0 = arith.constant 0 : i32
    %c0_i32_1 = arith.constant 0 : i32
    return %arg0, %c0_i32, %c0_i32_0 : i32, i32, i32
  }
}

</mosaic_0001>

<llo_original>
// kernel: tpu_custom_call.1
$region0: #{tpu_custom_call.1}
  #allocation0 [shape = 'u32[]', space=smem, size = 0x4, offset = 0x4, fixed_abs, tag = 'smem constant byte address 0x4 - core index']
  #allocation1 [shape = 'u32[72,128]{1,0:T(1,128)}', space=vmem, size = 0x9000, scoped, tag = 'internal scratch']
  %s0 = inlined_call_operand.hbm [shape: f32[1,128], index: 0, kind: input, shape index: {}]
  %s1 = inlined_call_operand.hbm [shape: f32[1,128], index: 1, kind: input, shape index: {}]
  %s2 = inlined_call_operand.hbm [shape: s32[1,128], index: 2, kind: input, shape index: {}]
  %s3 = inlined_call_operand.vmem [shape: bf16[4,128], index: 3, kind: input, shape index: {}]
  %s4 = inlined_call_operand.hbm [shape: bf16[4,128], index: 4, kind: input, shape index: {}]
  %s5 = inlined_call_operand.hbm [shape: f32[1,128], index: 5, kind: output, shape index: {0}]
  %s6 = inlined_call_operand.hbm [shape: f32[1,8,128], index: 6, kind: output, shape index: {1}]
  %7 = xla_tuple %s5, %s6
  %s8 = sld [smem:[#allocation0]]
  $region54: #{tpu_custom_call.1} parent=0
    _
  %s10 = ssub.s32 1, %s8
  %s11 = scalar_select 0, %s10, %s8
  $region1: #{tpu_custom_call.1} parent=0
    #allocation2 [shape = 'u8[512]{0}', space=vmem, size = 0x400, scoped, tag = 'input window, operand 0, single buffered']
    #allocation3 [shape = 's32[1]{0}', space=sflag, size = 0x4, scoped, tag = 'scoped memory for tpu_custom_call.1']
    #allocation4 [shape = 's32[1]{0}', space=sflag, size = 0x4, scoped, tag = 'scoped memory for tpu_custom_call.1']
    #allocation5 [shape = 'u8[512]{0}', space=vmem, size = 0x400, scoped, tag = 'input window, operand 1, single buffered']
    #allocation6 [shape = 's32[1]{0}', space=sflag, size = 0x4, scoped, tag = 'scoped memory for tpu_custom_call.1']
    #allocation7 [shape = 'u8[512]{0}', space=vmem, size = 0x400, scoped, tag = 'input window, operand 2, single buffered']
    #allocation8 [shape = 'u8[1024]{0}', space=vmem, size = 0x400, scoped, tag = 'input window, operand 4, single buffered']
    #allocation9 [shape = 's32[1]{0}', space=sflag, size = 0x4, scoped, tag = 'scoped memory for tpu_custom_call.1']
    #allocation10 [shape = 'u8[512]{0}', space=vmem, size = 0x400, scoped, tag = 'output window, operand 0, single buffered']
    #allocation11 [shape = 'u8[4096]{0}', space=vmem, size = 0x1000, scoped, tag = 'output window, operand 1, single buffered']
    #allocation12 [shape = 's32[1]{0}', space=sflag, size = 0x4, scoped, tag = 'scoped memory for tpu_custom_call.1']
    %12 = vsyncpa [#allocation3], 0
    %13 = vsyncpa [#allocation6], 0
    %14 = vsyncpa [#allocation9], 0
    %15 = vsyncpa [#allocation4], 0
    %16 = vsyncpa [#allocation12], 0
    // Predicated region
    $region2: #{tpu_custom_call.1} parent=1 // pred_check
      _
    $region3: #{tpu_custom_call.1} parent=1 // pred_check_branch
      %18 = sbr.rel (0) target = $region5
    $region4: #{tpu_custom_call.1} parent=1 // pred_region
      %20 = vsyncadd [#allocation3], 0
      %s22 = sshll.u32 %s0, 4
      %s23 = int_to_ptr.hbm [resolvable:$true] %s22
      %s24 = sshll.u32 [#allocation2], 4
      %s25 = int_to_ptr.vmem [resolvable:$true] %s24
      %27 = dma.hbm_to_vmem [thread:$0]  %s23, 16, %s25, [#allocation3]
    $region5: #{tpu_custom_call.1} parent=1 // pred_fallthru
      _
    // Predicated region
    $region6: #{tpu_custom_call.1} parent=1 // pred_check
      _
    $region7: #{tpu_custom_call.1} parent=1 // pred_check_branch
      %29 = sbr.rel (0) target = $region9
    $region8: #{tpu_custom_call.1} parent=1 // pred_region
      %31 = vsyncadd [#allocation6], 0
      %s33 = sshll.u32 %s1, 4
      %s34 = int_to_ptr.hbm [resolvable:$true] %s33
      %s35 = sshll.u32 [#allocation5], 4
      %s36 = int_to_ptr.vmem [resolvable:$true] %s35
      %38 = dma.hbm_to_vmem [thread:$0]  %s34, 16, %s36, [#allocation6]
    $region9: #{tpu_custom_call.1} parent=1 // pred_fallthru
      _
    // Predicated region
    $region10: #{tpu_custom_call.1} parent=1 // pred_check
      _
    $region11: #{tpu_custom_call.1} parent=1 // pred_check_branch
      %40 = sbr.rel (0) target = $region13
    $region12: #{tpu_custom_call.1} parent=1 // pred_region
      %42 = vsyncadd [#allocation6], 0
      %s44 = sshll.u32 %s2, 4
      %s45 = int_to_ptr.hbm [resolvable:$true] %s44
      %s46 = sshll.u32 [#allocation7], 4
      %s47 = int_to_ptr.vmem [resolvable:$true] %s46
      %49 = dma.hbm_to_vmem [thread:$0]  %s45, 16, %s47, [#allocation6]
    $region13: #{tpu_custom_call.1} parent=1 // pred_fallthru
      _
    // Predicated region
    $region14: #{tpu_custom_call.1} parent=1 // pred_check
      _
    $region15: #{tpu_custom_call.1} parent=1 // pred_check_branch
      %51 = sbr.rel (0) target = $region17
    $region16: #{tpu_custom_call.1} parent=1 // pred_region
      _
    $region17: #{tpu_custom_call.1} parent=1 // pred_fallthru
      _
    // Predicated region
    $region18: #{tpu_custom_call.1} parent=1 // pred_check
      _
    $region19: #{tpu_custom_call.1} parent=1 // pred_check_branch
      %53 = sbr.rel (0) target = $region21
    $region20: #{tpu_custom_call.1} parent=1 // pred_region
      %55 = vsyncadd [#allocation9], 0
      %s57 = sshll.u32 %s4, 4
      %s58 = int_to_ptr.hbm [resolvable:$true] %s57
      %s59 = sshll.u32 [#allocation8], 4
      %s60 = int_to_ptr.vmem [resolvable:$true] %s59
      %62 = dma.hbm_to_vmem [thread:$0]  %s58, 32, %s60, [#allocation9]
    $region21: #{tpu_custom_call.1} parent=1 // pred_fallthru
      _
    // Predicated region
    $region22: #{tpu_custom_call.1} parent=1 // pred_check
      _
    $region23: #{tpu_custom_call.1} parent=1 // pred_check_branch
      %64 = sbr.rel (0) target = $region25
    $region24: #{tpu_custom_call.1} parent=1 // pred_region
      %66 = dma.done [#allocation3], 16
    $region25: #{tpu_custom_call.1} parent=1 // pred_fallthru
      _
    // Predicated region
    $region26: #{tpu_custom_call.1} parent=1 // pred_check
      _
    $region27: #{tpu_custom_call.1} parent=1 // pred_check_branch
      %68 = sbr.rel (0) target = $region29
    $region28: #{tpu_custom_call.1} parent=1 // pred_region
      %70 = dma.done [#allocation6], 16
    $region29: #{tpu_custom_call.1} parent=1 // pred_fallthru
      _
    // Predicated region
    $region30: #{tpu_custom_call.1} parent=1 // pred_check
      _
    $region31: #{tpu_custom_call.1} parent=1 // pred_check_branch
      %72 = sbr.rel (0) target = $region33
    $region32: #{tpu_custom_call.1} parent=1 // pred_region
      %74 = dma.done [#allocation6], 16
    $region33: #{tpu_custom_call.1} parent=1 // pred_fallthru
      _
    // Predicated region
    $region34: #{tpu_custom_call.1} parent=1 // pred_check
      _
    $region35: #{tpu_custom_call.1} parent=1 // pred_check_branch
      %76 = sbr.rel (0) target = $region37
    $region36: #{tpu_custom_call.1} parent=1 // pred_region
      %78 = dma.done [#allocation9], 32
    $region37: #{tpu_custom_call.1} parent=1 // pred_fallthru
      _
    %v79 = vld [vmem:[#allocation2] sm:$0x1]
    %v80 = vld [vmem:[#allocation5] sm:$0x1]
    %v81 = vld [vmem:[#allocation7] sm:$0x1]
    %v82 = vld [vmem:[%s3] sm:$0x3]
    %v83 = vunpack.c.l.bf16 %v82
    %v84 = vld [vmem:[#allocation8] sm:$0x3]
    %v85 = vunpack.c.l.bf16 %v84
    %v86 = vlaneseq
    %v87 = vand.u32 %v86, 127
    %s88 = smul.u32 0, 128
    %v89 = vstv %s88
    %v90 = vadd.s32 %v89, %v87
    %vm91 = vcmp.lt.s32.totalorder %v90, 16
    %v92 = vsel %vm91, 1, 0
    %v93 = vcvt.s32.f32 %v92
    %v94 = vlog2.pop %v79
    %v95 = vmul.f32 %v94, 0.6931472
    %v96 = vmax.f32 %v95, -100.0
    %v97 = vsub.f32 1.0, %v79
    %v98 = vlog2.pop %v97
    %v99 = vmul.f32 %v98, 0.6931472
    %v100 = vmax.f32 %v99, -100.0
    %v101 = vmul.f32 %v80, %v96
    %v102 = vsub.f32 1.0, %v80
    %v103 = vmul.f32 %v102, %v100
    %v104 = vadd.f32 %v101, %v103
    %v105 = vsub.f32 0.0, %v104
    %v106 = vmul.f32 %v105, %v93
    %vm107 = vcmask 1040384
    %v108 = vsel %vm107, %v106, 0.0
    %109 = vadd.xlane.f32.xlu0 %v108
    %v110 = vpop.xlane.xlu0 %109
    %vm111 = vcmp.gt.f32.partialorder %v80, 0.0
    %v112 = vsel %vm111, %v93, 0.0
    %v113 = vsel %vm107, %v112, 0.0
    %114 = vadd.xlane.f32.xlu0 %v113
    %v115 = vpop.xlane.xlu0 %114
    %v116 = vlaneseq
    %v117 = vshrl.u32 %v116, 7
    %v118 = vperm.slane %v81, 0
    %vm119 = vcmp.eq.s32.totalorder %v117, %v118
    %vm120 = vcmask 1043456
    %v121 = vsel %vm120, %v83, -inf
    %v122 = vrot.slane %v121, 4
    %v123 = vmax.f32 %v121, %v122
    %v124 = vrot.slane %v123, 2
    %v125 = vmax.f32 %v123, %v124
    %v126 = vrot.slane %v125, 1
    %v127 = vmax.f32 %v125, %v126
    %v128 = vsub.f32 %v83, %v127
    %v129 = vmul.f32 %v128, 1.442695
    %v130 = vpow.pop %v129
    %v131 = vsel %vm120, %v130, 0.0
    %v132 = vrot.slane %v131, 4
    %v133 = vadd.f32 %v131, %v132
    %v134 = vrot.slane %v133, 2
    %v135 = vadd.f32 %v133, %v134
    %v136 = vrot.slane %v135, 1
    %v137 = vadd.f32 %v135, %v136
    %v138 = vlog2.pop %v137
    %v139 = vmul.f32 %v138, 0.6931472
    %v140 = vadd.f32 %v127, %v139
    %v141 = vsel %vm119, %v83, 0.0
    %v142 = vsel %vm120, %v141, 0.0
    %v143 = vrot.slane %v142, 4
    %v144 = vadd.f32 %v142, %v143
    %v145 = vrot.slane %v144, 2
    %v146 = vadd.f32 %v144, %v145
    %v147 = vrot.slane %v146, 1
    %v148 = vadd.f32 %v146, %v147
    %v149 = vsub.f32 %v140, %v148
    %v150 = vmul.f32 %v149, %v112
    %v151 = vsel %vm120, %v85, -inf
    %v152 = vrot.slane %v151, 4
    %v153 = vmax.f32 %v151, %v152
    %v154 = vrot.slane %v153, 2
    %v155 = vmax.f32 %v153, %v154
    %v156 = vrot.slane %v155, 1
    %v157 = vmax.f32 %v155, %v156
    %v158 = vsub.f32 %v85, %v157
    %v159 = vmul.f32 %v158, 1.442695
    %v160 = vpow.pop %v159
    %v161 = vsel %vm120, %v160, 0.0
    %v162 = vrot.slane %v161, 4
    %v163 = vadd.f32 %v161, %v162
    %v164 = vrot.slane %v163, 2
    %v165 = vadd.f32 %v163, %v164
    %v166 = vrot.slane %v165, 1
    %v167 = vadd.f32 %v165, %v166
    %v168 = vlog2.pop %v167
    %v169 = vmul.f32 %v168, 0.6931472
    %v170 = vadd.f32 %v157, %v169
    %v171 = vsel %vm119, %v85, 0.0
    %v172 = vsel %vm120, %v171, 0.0
    %v173 = vrot.slane %v172, 4
    %v174 = vadd.f32 %v172, %v173
    %v175 = vrot.slane %v174, 2
    %v176 = vadd.f32 %v174, %v175
    %v177 = vrot.slane %v176, 1
    %v178 = vadd.f32 %v176, %v177
    %v179 = vsub.f32 %v170, %v178
    %v180 = vmul.f32 %v179, %v112
    %181 = vst [vmem:[#allocation10] sm:$0x1] %v150
    %v182 = vsel %vm107, %v150, 0.0
    %183 = vadd.xlane.f32.xlu0 %v182
    %v184 = vpop.xlane.xlu0 %183
    %v185 = vmul.f32 %v150, %v180
    %v186 = vsel %vm107, %v185, 0.0
    %187 = vadd.xlane.f32.xlu0 %v186
    %v188 = vpop.xlane.xlu0 %187
    %vm189 = vcmp.eq.s32.totalorder %v87, 0
    %v190 = vperm.slane %v110, 0
    %v191 = vsel %vm189, %v190, 0.0
    %vm192 = vcmp.eq.s32.totalorder %v87, 1
    %v193 = vperm.slane %v184, 0
    %v194 = vsel %vm192, %v193, 0.0
    %v195 = vadd.f32 %v191, %v194
    %vm196 = vcmp.eq.s32.totalorder %v87, 2
    %v197 = vperm.slane %v188, 0
    %v198 = vsel %vm196, %v197, 0.0
    %v199 = vadd.f32 %v195, %v198
    %vm200 = vcmp.eq.s32.totalorder %v87, 3
    %v201 = vperm.slane %v115, 0
    %v202 = vsel %vm200, %v201, 0.0
    %v203 = vadd.f32 %v199, %v202
    %204 = vst [vmem:[#allocation11] sm:$0xff] %v203
    // Predicated region
    $region38: #{tpu_custom_call.1} parent=1 // pred_check
      _
    $region39: #{tpu_custom_call.1} parent=1 // pred_check_branch
      %206 = sbr.rel (0) target = $region41
    $region40: #{tpu_custom_call.1} parent=1 // pred_region
      %208 = vsyncadd [#allocation4], 0
      %s210 = sshll.u32 [#allocation10], 4
      %s211 = int_to_ptr.vmem [resolvable:$true] %s210
      %s212 = sshll.u32 %s5, 4
      %s213 = int_to_ptr.hbm [resolvable:$true] %s212
      %215 = dma.vmem_to_hbm [thread:$0]  %s211, 16, %s213, [#allocation4]
    $region41: #{tpu_custom_call.1} parent=1 // pred_fallthru
      _
    // Predicated region
    $region42: #{tpu_custom_call.1} parent=1 // pred_check
      _
    $region43: #{tpu_custom_call.1} parent=1 // pred_check_branch
      %217 = sbr.rel (0) target = $region45
    $region44: #{tpu_custom_call.1} parent=1 // pred_region
      %219 = vsyncadd [#allocation12], 0
      %s221 = sshll.u32 [#allocation11], 4
      %s222 = int_to_ptr.vmem [resolvable:$true] %s221
      %s223 = sshll.u32 %s6, 4
      %s224 = int_to_ptr.hbm [resolvable:$true] %s223
      %226 = dma.vmem_to_hbm [thread:$0]  %s222, 128, %s224, [#allocation12]
    $region45: #{tpu_custom_call.1} parent=1 // pred_fallthru
      _
    // Predicated region
    $region46: #{tpu_custom_call.1} parent=1 // pred_check
      _
    $region47: #{tpu_custom_call.1} parent=1 // pred_check_branch
      %228 = sbr.rel (0) target = $region49
    $region48: #{tpu_custom_call.1} parent=1 // pred_region
      %230 = dma.done [#allocation4], 16
    $region49: #{tpu_custom_call.1} parent=1 // pred_fallthru
      _
    // Predicated region
    $region50: #{tpu_custom_call.1} parent=1 // pred_check
      _
    $region51: #{tpu_custom_call.1} parent=1 // pred_check_branch
      %232 = sbr.rel (0) target = $region53
    $region52: #{tpu_custom_call.1} parent=1 // pred_region
      %234 = dma.done [#allocation12], 128
    $region53: #{tpu_custom_call.1} parent=1 // pred_fallthru
      _
    %235 = vsyncpa [#allocation3], 1
    %236 = vsyncpa [#allocation6], 1
    %237 = vsyncpa [#allocation9], 1
    %238 = vsyncpa [#allocation4], 1
    %239 = vsyncpa [#allocation12], 1

</llo_original>
